<compile_context>
chip_gen: v7x
topology: tpu7x:2x2x1
jax: 0.10.0
libtpu: 0.0.40
codegen_flags: <defaults>
</compile_context>

<pallas_src>
import jax
import jax.numpy as jnp
from jax.experimental import pallas as pl
from jax.experimental.pallas import tpu as pltpu

SUB = 8          # sublane rows per tile (full vreg height for f32)
LANE = 128       # lane width granularity
TN_MAX = 2048    # max lane tile -> (8, 2048) f32 = 64 KiB per input block


def mlp_kernel(w1_ref, b1_ref, w2_ref, b2_ref, x_ref, o_ref):
    # w1_ref/b1_ref/w2_ref: (hidden,) f32 in SMEM; b2_ref: (1,) f32 in SMEM
    # x_ref / o_ref: (SUB, TN) f32 tiles, sublane+lane dense
    x = x_ref[...]                                  # (SUB, TN)
    hidden = w1_ref.shape[0]                        # static (10) -> unrolled
    acc = jnp.zeros_like(x)
    for j in range(hidden):
        # Layer 1 affine (scalar * vector, VPU) -> sigmoid (EUP) -> weighted
        # accumulate for layer 2 (scalar * vector + add, VPU).
        h = jax.nn.sigmoid(w1_ref[j] * x + b1_ref[j])
        acc = acc + w2_ref[j] * h
    o_ref[...] = (acc + b2_ref[0]).astype(o_ref.dtype)


def mlp_forward(x, w1, b1, w2, b2):
    """x: (N, 1). Weights in PyTorch layout: w1 (H, 1), b1 (H,), w2 (1, H), b2 (1,)."""
    n, in_features = x.shape
    assert in_features == 1, "kernel specialized for input_size == 1"
    hidden = w1.shape[0]
    assert w2.shape == (1, hidden), "kernel specialized for output_size == 1"

    # Choose a lane tile: as large as possible (<= TN_MAX) to amortize
    # per-step overhead, but multiple of 128 for the (8,128) constraint.
    lanes_needed = -(-n // SUB)                        # cdiv(n, 8)
    lanes_min = -(-lanes_needed // LANE) * LANE        # round up to 128
    tn = min(TN_MAX, lanes_min)
    lanes_pad = -(-lanes_needed // tn) * tn            # multiple of tn
    n_pad = SUB * lanes_pad

    # Single cheap pad of the flat batch, then view as a dense (8, lanes) slab.
    # Padded tail lanes produce garbage that is discarded by the final slice.
    x_flat = jnp.pad(x.reshape(-1), (0, n_pad - n))
    x_slab = x_flat.reshape(SUB, lanes_pad)

    grid = (lanes_pad // tn,)
    out_slab = pl.pallas_call(
        mlp_kernel,
        out_shape=jax.ShapeDtypeStruct((SUB, lanes_pad), x.dtype),
        grid=grid,
        in_specs=[
            pl.BlockSpec(memory_space=pltpu.MemorySpace.SMEM),   # w1 (hidden,)
            pl.BlockSpec(memory_space=pltpu.MemorySpace.SMEM),   # b1 (hidden,)
            pl.BlockSpec(memory_space=pltpu.MemorySpace.SMEM),   # w2 (hidden,)
            pl.BlockSpec(memory_space=pltpu.MemorySpace.SMEM),   # b2 (1,)
            pl.BlockSpec((SUB, tn), lambda i: (0, i)),           # x tile
        ],
        out_specs=pl.BlockSpec((SUB, tn), lambda i: (0, i)),     # y tile (lane-dense)
        compiler_params=pltpu.CompilerParams(
            dimension_semantics=("parallel",),   # shards across TCs on v7x for large N
        ),
    )(
        w1.reshape(hidden),
        b1.reshape(hidden),
        w2.reshape(hidden),
        b2.reshape(1),
        x_slab,
    )

    # Back to the PyTorch output layout (N, 1), dropping padding.
    return out_slab.reshape(-1)[:n].reshape(n, 1)


def init_params(key, input_size=1, hidden_size=10, output_size=1):
    # Deterministic init mimicking PyTorch nn.Linear default:
    # uniform(-1/sqrt(fan_in), 1/sqrt(fan_in)), stored in PyTorch layout.
    k1, k2, k3, k4 = jax.random.split(key, 4)
    bound1 = 1.0 / jnp.sqrt(jnp.float32(input_size))
    bound2 = 1.0 / jnp.sqrt(jnp.float32(hidden_size))
    w1 = jax.random.uniform(k1, (hidden_size, input_size), jnp.float32, -bound1, bound1)
    b1 = jax.random.uniform(k2, (hidden_size,), jnp.float32, -bound1, bound1)
    w2 = jax.random.uniform(k3, (output_size, hidden_size), jnp.float32, -bound2, bound2)
    b2 = jax.random.uniform(k4, (output_size,), jnp.float32, -bound2, bound2)
    return w1, b1, w2, b2


if __name__ == "__main__":
    key = jax.random.PRNGKey(0)
    k_x, k_p = jax.random.split(key)

    N, input_size, hidden_size, output_size = 100, 1, 10, 1
    x = jax.random.uniform(k_x, (N, input_size), jnp.float32)  # ~ torch.rand(100, 1)
    w1, b1, w2, b2 = init_params(k_p, input_size, hidden_size, output_size)

    out = mlp_forward(x, w1, b1, w2, b2)
    jax.block_until_ready(out)

    # Cross-check against plain-JAX reference (PyTorch semantics: x @ W.T + b).
    h_ref = jax.nn.sigmoid(x @ w1.T + b1[None, :])
    ref = h_ref @ w2.T + b2[None, :]
    assert out.shape == (N, output_size)
    assert jnp.max(jnp.abs(out - ref)) < 1e-5

    print("KERNEL_OK")
</pallas_src>

<mosaic_0001>
module attributes {stable_mosaic.version = 11 : i64} {
  func.func @mlp_kernel(%arg0: i32, %arg1: memref<10xf32, #tpu.memory_space<smem>>, %arg2: memref<10xf32, #tpu.memory_space<smem>>, %arg3: memref<10xf32, #tpu.memory_space<smem>>, %arg4: memref<1xf32, #tpu.memory_space<smem>>, %arg5: memref<8x128xf32, #tpu.memory_space<vmem>>, %arg6: memref<8x128xf32, #tpu.memory_space<vmem>>) attributes {dimension_semantics = [#tpu.dimension_semantics<parallel>], iteration_bounds = array<i64: 1>, scalar_prefetch = 0 : i64, scratch_operands = 0 : i64, tpu.core_type = #tpu.core_type<tc>, window_params = [{transform_indices = @transform_0, window_bounds = array<i64: 10>}, {transform_indices = @transform_1, window_bounds = array<i64: 10>}, {transform_indices = @transform_2, window_bounds = array<i64: 10>}, {transform_indices = @transform_3, window_bounds = array<i64: 1>}, {transform_indices = @transform_4, window_bounds = array<i64: 8, 128>}, {transform_indices = @transform_5, window_bounds = array<i64: 8, 128>}]} {
    %c0 = arith.constant 0 : index
    %c0_0 = arith.constant 0 : index
    %0 = vector.load %arg5[%c0, %c0_0] : memref<8x128xf32, #tpu.memory_space<vmem>>, vector<8x128xf32>
    %cst = arith.constant 0.000000e+00 : f32
    %1 = vector.broadcast %cst : f32 to vector<8x128xf32>
    %c0_1 = arith.constant 0 : index
    %2 = memref.load %arg1[%c0_1] : memref<10xf32, #tpu.memory_space<smem>>
    %3 = vector.broadcast %2 : f32 to vector<8x128xf32>
    %4 = arith.mulf %3, %0 : vector<8x128xf32>
    %c0_2 = arith.constant 0 : index
    %5 = memref.load %arg2[%c0_2] : memref<10xf32, #tpu.memory_space<smem>>
    %6 = vector.broadcast %5 : f32 to vector<8x128xf32>
    %7 = arith.addf %4, %6 : vector<8x128xf32>
    %8 = arith.negf %7 : vector<8x128xf32>
    %9 = math.exp %8 : vector<8x128xf32>
    %cst_3 = arith.constant 1.000000e+00 : f32
    %10 = vector.broadcast %cst_3 : f32 to vector<8x128xf32>
    %11 = arith.addf %10, %9 : vector<8x128xf32>
    %12 = arith.divf %10, %11 : vector<8x128xf32>
    %c0_4 = arith.constant 0 : index
    %13 = memref.load %arg3[%c0_4] : memref<10xf32, #tpu.memory_space<smem>>
    %14 = vector.broadcast %13 : f32 to vector<8x128xf32>
    %15 = arith.mulf %14, %12 : vector<8x128xf32>
    %16 = arith.addf %1, %15 : vector<8x128xf32>
    %c1 = arith.constant 1 : index
    %17 = memref.load %arg1[%c1] : memref<10xf32, #tpu.memory_space<smem>>
    %18 = vector.broadcast %17 : f32 to vector<8x128xf32>
    %19 = arith.mulf %18, %0 : vector<8x128xf32>
    %c1_5 = arith.constant 1 : index
    %20 = memref.load %arg2[%c1_5] : memref<10xf32, #tpu.memory_space<smem>>
    %21 = vector.broadcast %20 : f32 to vector<8x128xf32>
    %22 = arith.addf %19, %21 : vector<8x128xf32>
    %23 = arith.negf %22 : vector<8x128xf32>
    %24 = math.exp %23 : vector<8x128xf32>
    %cst_6 = arith.constant 1.000000e+00 : f32
    %25 = vector.broadcast %cst_6 : f32 to vector<8x128xf32>
    %26 = arith.addf %25, %24 : vector<8x128xf32>
    %27 = arith.divf %25, %26 : vector<8x128xf32>
    %c1_7 = arith.constant 1 : index
    %28 = memref.load %arg3[%c1_7] : memref<10xf32, #tpu.memory_space<smem>>
    %29 = vector.broadcast %28 : f32 to vector<8x128xf32>
    %30 = arith.mulf %29, %27 : vector<8x128xf32>
    %31 = arith.addf %16, %30 : vector<8x128xf32>
    %c2 = arith.constant 2 : index
    %32 = memref.load %arg1[%c2] : memref<10xf32, #tpu.memory_space<smem>>
    %33 = vector.broadcast %32 : f32 to vector<8x128xf32>
    %34 = arith.mulf %33, %0 : vector<8x128xf32>
    %c2_8 = arith.constant 2 : index
    %35 = memref.load %arg2[%c2_8] : memref<10xf32, #tpu.memory_space<smem>>
    %36 = vector.broadcast %35 : f32 to vector<8x128xf32>
    %37 = arith.addf %34, %36 : vector<8x128xf32>
    %38 = arith.negf %37 : vector<8x128xf32>
    %39 = math.exp %38 : vector<8x128xf32>
    %cst_9 = arith.constant 1.000000e+00 : f32
    %40 = vector.broadcast %cst_9 : f32 to vector<8x128xf32>
    %41 = arith.addf %40, %39 : vector<8x128xf32>
    %42 = arith.divf %40, %41 : vector<8x128xf32>
    %c2_10 = arith.constant 2 : index
    %43 = memref.load %arg3[%c2_10] : memref<10xf32, #tpu.memory_space<smem>>
    %44 = vector.broadcast %43 : f32 to vector<8x128xf32>
    %45 = arith.mulf %44, %42 : vector<8x128xf32>
    %46 = arith.addf %31, %45 : vector<8x128xf32>
    %c3 = arith.constant 3 : index
    %47 = memref.load %arg1[%c3] : memref<10xf32, #tpu.memory_space<smem>>
    %48 = vector.broadcast %47 : f32 to vector<8x128xf32>
    %49 = arith.mulf %48, %0 : vector<8x128xf32>
    %c3_11 = arith.constant 3 : index
    %50 = memref.load %arg2[%c3_11] : memref<10xf32, #tpu.memory_space<smem>>
    %51 = vector.broadcast %50 : f32 to vector<8x128xf32>
    %52 = arith.addf %49, %51 : vector<8x128xf32>
    %53 = arith.negf %52 : vector<8x128xf32>
    %54 = math.exp %53 : vector<8x128xf32>
    %cst_12 = arith.constant 1.000000e+00 : f32
    %55 = vector.broadcast %cst_12 : f32 to vector<8x128xf32>
    %56 = arith.addf %55, %54 : vector<8x128xf32>
    %57 = arith.divf %55, %56 : vector<8x128xf32>
    %c3_13 = arith.constant 3 : index
    %58 = memref.load %arg3[%c3_13] : memref<10xf32, #tpu.memory_space<smem>>
    %59 = vector.broadcast %58 : f32 to vector<8x128xf32>
    %60 = arith.mulf %59, %57 : vector<8x128xf32>
    %61 = arith.addf %46, %60 : vector<8x128xf32>
    %c4 = arith.constant 4 : index
    %62 = memref.load %arg1[%c4] : memref<10xf32, #tpu.memory_space<smem>>
    %63 = vector.broadcast %62 : f32 to vector<8x128xf32>
    %64 = arith.mulf %63, %0 : vector<8x128xf32>
    %c4_14 = arith.constant 4 : index
    %65 = memref.load %arg2[%c4_14] : memref<10xf32, #tpu.memory_space<smem>>
    %66 = vector.broadcast %65 : f32 to vector<8x128xf32>
    %67 = arith.addf %64, %66 : vector<8x128xf32>
    %68 = arith.negf %67 : vector<8x128xf32>
    %69 = math.exp %68 : vector<8x128xf32>
    %cst_15 = arith.constant 1.000000e+00 : f32
    %70 = vector.broadcast %cst_15 : f32 to vector<8x128xf32>
    %71 = arith.addf %70, %69 : vector<8x128xf32>
    %72 = arith.divf %70, %71 : vector<8x128xf32>
    %c4_16 = arith.constant 4 : index
    %73 = memref.load %arg3[%c4_16] : memref<10xf32, #tpu.memory_space<smem>>
    %74 = vector.broadcast %73 : f32 to vector<8x128xf32>
    %75 = arith.mulf %74, %72 : vector<8x128xf32>
    %76 = arith.addf %61, %75 : vector<8x128xf32>
    %c5 = arith.constant 5 : index
    %77 = memref.load %arg1[%c5] : memref<10xf32, #tpu.memory_space<smem>>
    %78 = vector.broadcast %77 : f32 to vector<8x128xf32>
    %79 = arith.mulf %78, %0 : vector<8x128xf32>
    %c5_17 = arith.constant 5 : index
    %80 = memref.load %arg2[%c5_17] : memref<10xf32, #tpu.memory_space<smem>>
    %81 = vector.broadcast %80 : f32 to vector<8x128xf32>
    %82 = arith.addf %79, %81 : vector<8x128xf32>
    %83 = arith.negf %82 : vector<8x128xf32>
    %84 = math.exp %83 : vector<8x128xf32>
    %cst_18 = arith.constant 1.000000e+00 : f32
    %85 = vector.broadcast %cst_18 : f32 to vector<8x128xf32>
    %86 = arith.addf %85, %84 : vector<8x128xf32>
    %87 = arith.divf %85, %86 : vector<8x128xf32>
    %c5_19 = arith.constant 5 : index
    %88 = memref.load %arg3[%c5_19] : memref<10xf32, #tpu.memory_space<smem>>
    %89 = vector.broadcast %88 : f32 to vector<8x128xf32>
    %90 = arith.mulf %89, %87 : vector<8x128xf32>
    %91 = arith.addf %76, %90 : vector<8x128xf32>
    %c6 = arith.constant 6 : index
    %92 = memref.load %arg1[%c6] : memref<10xf32, #tpu.memory_space<smem>>
    %93 = vector.broadcast %92 : f32 to vector<8x128xf32>
    %94 = arith.mulf %93, %0 : vector<8x128xf32>
    %c6_20 = arith.constant 6 : index
    %95 = memref.load %arg2[%c6_20] : memref<10xf32, #tpu.memory_space<smem>>
    %96 = vector.broadcast %95 : f32 to vector<8x128xf32>
    %97 = arith.addf %94, %96 : vector<8x128xf32>
    %98 = arith.negf %97 : vector<8x128xf32>
    %99 = math.exp %98 : vector<8x128xf32>
    %cst_21 = arith.constant 1.000000e+00 : f32
    %100 = vector.broadcast %cst_21 : f32 to vector<8x128xf32>
    %101 = arith.addf %100, %99 : vector<8x128xf32>
    %102 = arith.divf %100, %101 : vector<8x128xf32>
    %c6_22 = arith.constant 6 : index
    %103 = memref.load %arg3[%c6_22] : memref<10xf32, #tpu.memory_space<smem>>
    %104 = vector.broadcast %103 : f32 to vector<8x128xf32>
    %105 = arith.mulf %104, %102 : vector<8x128xf32>
    %106 = arith.addf %91, %105 : vector<8x128xf32>
    %c7 = arith.constant 7 : index
    %107 = memref.load %arg1[%c7] : memref<10xf32, #tpu.memory_space<smem>>
    %108 = vector.broadcast %107 : f32 to vector<8x128xf32>
    %109 = arith.mulf %108, %0 : vector<8x128xf32>
    %c7_23 = arith.constant 7 : index
    %110 = memref.load %arg2[%c7_23] : memref<10xf32, #tpu.memory_space<smem>>
    %111 = vector.broadcast %110 : f32 to vector<8x128xf32>
    %112 = arith.addf %109, %111 : vector<8x128xf32>
    %113 = arith.negf %112 : vector<8x128xf32>
    %114 = math.exp %113 : vector<8x128xf32>
    %cst_24 = arith.constant 1.000000e+00 : f32
    %115 = vector.broadcast %cst_24 : f32 to vector<8x128xf32>
    %116 = arith.addf %115, %114 : vector<8x128xf32>
    %117 = arith.divf %115, %116 : vector<8x128xf32>
    %c7_25 = arith.constant 7 : index
    %118 = memref.load %arg3[%c7_25] : memref<10xf32, #tpu.memory_space<smem>>
    %119 = vector.broadcast %118 : f32 to vector<8x128xf32>
    %120 = arith.mulf %119, %117 : vector<8x128xf32>
    %121 = arith.addf %106, %120 : vector<8x128xf32>
    %c8 = arith.constant 8 : index
    %122 = memref.load %arg1[%c8] : memref<10xf32, #tpu.memory_space<smem>>
    %123 = vector.broadcast %122 : f32 to vector<8x128xf32>
    %124 = arith.mulf %123, %0 : vector<8x128xf32>
    %c8_26 = arith.constant 8 : index
    %125 = memref.load %arg2[%c8_26] : memref<10xf32, #tpu.memory_space<smem>>
    %126 = vector.broadcast %125 : f32 to vector<8x128xf32>
    %127 = arith.addf %124, %126 : vector<8x128xf32>
    %128 = arith.negf %127 : vector<8x128xf32>
    %129 = math.exp %128 : vector<8x128xf32>
    %cst_27 = arith.constant 1.000000e+00 : f32
    %130 = vector.broadcast %cst_27 : f32 to vector<8x128xf32>
    %131 = arith.addf %130, %129 : vector<8x128xf32>
    %132 = arith.divf %130, %131 : vector<8x128xf32>
    %c8_28 = arith.constant 8 : index
    %133 = memref.load %arg3[%c8_28] : memref<10xf32, #tpu.memory_space<smem>>
    %134 = vector.broadcast %133 : f32 to vector<8x128xf32>
    %135 = arith.mulf %134, %132 : vector<8x128xf32>
    %136 = arith.addf %121, %135 : vector<8x128xf32>
    %c9 = arith.constant 9 : index
    %137 = memref.load %arg1[%c9] : memref<10xf32, #tpu.memory_space<smem>>
    %138 = vector.broadcast %137 : f32 to vector<8x128xf32>
    %139 = arith.mulf %138, %0 : vector<8x128xf32>
    %c9_29 = arith.constant 9 : index
    %140 = memref.load %arg2[%c9_29] : memref<10xf32, #tpu.memory_space<smem>>
    %141 = vector.broadcast %140 : f32 to vector<8x128xf32>
    %142 = arith.addf %139, %141 : vector<8x128xf32>
    %143 = arith.negf %142 : vector<8x128xf32>
    %144 = math.exp %143 : vector<8x128xf32>
    %cst_30 = arith.constant 1.000000e+00 : f32
    %145 = vector.broadcast %cst_30 : f32 to vector<8x128xf32>
    %146 = arith.addf %145, %144 : vector<8x128xf32>
    %147 = arith.divf %145, %146 : vector<8x128xf32>
    %c9_31 = arith.constant 9 : index
    %148 = memref.load %arg3[%c9_31] : memref<10xf32, #tpu.memory_space<smem>>
    %149 = vector.broadcast %148 : f32 to vector<8x128xf32>
    %150 = arith.mulf %149, %147 : vector<8x128xf32>
    %151 = arith.addf %136, %150 : vector<8x128xf32>
    %c0_32 = arith.constant 0 : index
    %152 = memref.load %arg4[%c0_32] : memref<1xf32, #tpu.memory_space<smem>>
    %153 = vector.broadcast %152 : f32 to vector<8x128xf32>
    %154 = arith.addf %151, %153 : vector<8x128xf32>
    %c0_33 = arith.constant 0 : index
    %c0_34 = arith.constant 0 : index
    %155 = vector.load %arg6[%c0_33, %c0_34] : memref<8x128xf32, #tpu.memory_space<vmem>>, vector<8x128xf32>
    tpu.vector_store %arg6[%c0_33, %c0_34], %154 {strides = array<i32>} : memref<8x128xf32, #tpu.memory_space<vmem>>, vector<8x128xf32>,
    return
  }
  func.func @transform_0(%arg0: i32) -> i32 {
    %c0_i32 = arith.constant 0 : i32
    %c0_i32_0 = arith.constant 0 : i32
    return %c0_i32 : i32
  }
  func.func @transform_1(%arg0: i32) -> i32 {
    %c0_i32 = arith.constant 0 : i32
    %c0_i32_0 = arith.constant 0 : i32
    return %c0_i32 : i32
  }
  func.func @transform_2(%arg0: i32) -> i32 {
    %c0_i32 = arith.constant 0 : i32
    %c0_i32_0 = arith.constant 0 : i32
    return %c0_i32 : i32
  }
  func.func @transform_3(%arg0: i32) -> i32 {
    %c0_i32 = arith.constant 0 : i32
    %c0_i32_0 = arith.constant 0 : i32
    return %c0_i32 : i32
  }
  func.func @transform_4(%arg0: i32) -> (i32, i32) {
    %c0_i32 = arith.constant 0 : i32
    %c0_i32_0 = arith.constant 0 : i32
    return %c0_i32, %arg0 : i32, i32
  }
  func.func @transform_5(%arg0: i32) -> (i32, i32) {
    %c0_i32 = arith.constant 0 : i32
    %c0_i32_0 = arith.constant 0 : i32
    return %c0_i32, %arg0 : i32, i32
  }
}

</mosaic_0001>

<llo_original>
// kernel: tpu_custom_call.1
$region0: #{tpu_custom_call.1}
  #allocation0 [shape = 'u32[]', space=smem, size = 0x4, offset = 0x4, fixed_abs, tag = 'smem constant byte address 0x4 - core index']
  #allocation1 [shape = 'u32[144,128]{1,0:T(1,128)}', space=vmem, size = 0x12000, scoped, tag = 'internal scratch']
  #allocation2 [shape = 'f32[1]{0:T(128)S(6)}', space=smem, size = 0x200, scoped, tag = 'scoped memory for tpu_custom_call.1']
  %s0 = inlined_call_operand.vmem [shape: f32[10], index: 0, kind: input, shape index: {}]
  %s1 = inlined_call_operand.vmem [shape: f32[10], index: 1, kind: input, shape index: {}]
  %s2 = inlined_call_operand.vmem [shape: f32[10], index: 2, kind: input, shape index: {}]
  %s3 = inlined_call_operand.<no memory space> [shape: f32[1], index: 3, kind: input, shape index: {}]
  %s4 = inlined_call_operand.vmem [shape: f32[8,128], index: 4, kind: input, shape index: {}]
  %s5 = inlined_call_operand.hbm [shape: f32[8,128], index: 5, kind: output, shape index: {}]
  %s6 = sld [smem:[#allocation0]]
  $region42: #{tpu_custom_call.1} parent=0
    _
  %s8 = ssub.s32 1, %s6
  %s9 = scalar_select 0, %s8, %s6
  %10 = sst [smem:[#allocation2]] %s3
  $region1: #{tpu_custom_call.1} parent=0
    #allocation3 [shape = 'u8[512]{0}', space=smem, size = 0x200, scoped, tag = 'input window, operand 0, single buffered']
    #allocation4 [shape = 's32[1]{0}', space=sflag, size = 0x4, scoped, tag = 'scoped memory for tpu_custom_call.1']
    #allocation5 [shape = 's32[1]{0}', space=sflag, size = 0x4, scoped, tag = 'scoped memory for tpu_custom_call.1']
    #allocation6 [shape = 'u8[512]{0}', space=smem, size = 0x200, scoped, tag = 'input window, operand 1, single buffered']
    #allocation7 [shape = 's32[1]{0}', space=sflag, size = 0x4, scoped, tag = 'scoped memory for tpu_custom_call.1']
    #allocation8 [shape = 'u8[512]{0}', space=smem, size = 0x200, scoped, tag = 'input window, operand 2, single buffered']
    #allocation9 [shape = 'u8[4096]{0}', space=vmem, size = 0x1000, scoped, tag = 'output window, operand 0, single buffered']
    %11 = vsyncpa [#allocation5], 0
    %12 = vsyncpa [#allocation7], 0
    %13 = vsyncpa [#allocation4], 0
    // Predicated region
    $region2: #{tpu_custom_call.1} parent=1 // pred_check
      _
    $region3: #{tpu_custom_call.1} parent=1 // pred_check_branch
      %15 = sbr.rel (0) target = $region5
    $region4: #{tpu_custom_call.1} parent=1 // pred_region
      %s17 = ssub.s32 16, 16
      %18 = vsyncadd [#allocation5], %s17
      %s20 = sshll.u32 %s0, 4
      %s21 = int_to_ptr.vmem [resolvable:$true] %s20
      %23 = dma.vmem_to_smem %s21, 16, [#allocation3], [#allocation5]
    $region5: #{tpu_custom_call.1} parent=1 // pred_fallthru
      _
    // Predicated region
    $region6: #{tpu_custom_call.1} parent=1 // pred_check
      _
    $region7: #{tpu_custom_call.1} parent=1 // pred_check_branch
      %25 = sbr.rel (0) target = $region9
    $region8: #{tpu_custom_call.1} parent=1 // pred_region
      %s27 = ssub.s32 16, 16
      %28 = vsyncadd [#allocation7], %s27
      %s30 = sshll.u32 %s1, 4
      %s31 = int_to_ptr.vmem [resolvable:$true] %s30
      %33 = dma.vmem_to_smem %s31, 16, [#allocation6], [#allocation7]
    $region9: #{tpu_custom_call.1} parent=1 // pred_fallthru
      _
    // Predicated region
    $region10: #{tpu_custom_call.1} parent=1 // pred_check
      _
    $region11: #{tpu_custom_call.1} parent=1 // pred_check_branch
      %35 = sbr.rel (0) target = $region13
    $region12: #{tpu_custom_call.1} parent=1 // pred_region
      %s37 = ssub.s32 16, 16
      %38 = vsyncadd [#allocation7], %s37
      %s40 = sshll.u32 %s2, 4
      %s41 = int_to_ptr.vmem [resolvable:$true] %s40
      %43 = dma.vmem_to_smem %s41, 16, [#allocation8], [#allocation7]
    $region13: #{tpu_custom_call.1} parent=1 // pred_fallthru
      _
    // Predicated region
    $region14: #{tpu_custom_call.1} parent=1 // pred_check
      _
    $region15: #{tpu_custom_call.1} parent=1 // pred_check_branch
      %45 = sbr.rel (0) target = $region17
    $region16: #{tpu_custom_call.1} parent=1 // pred_region
      _
    $region17: #{tpu_custom_call.1} parent=1 // pred_fallthru
      _
    // Predicated region
    $region18: #{tpu_custom_call.1} parent=1 // pred_check
      _
    $region19: #{tpu_custom_call.1} parent=1 // pred_check_branch
      %47 = sbr.rel (0) target = $region21
    $region20: #{tpu_custom_call.1} parent=1 // pred_region
      _
    $region21: #{tpu_custom_call.1} parent=1 // pred_fallthru
      _
    // Predicated region
    $region22: #{tpu_custom_call.1} parent=1 // pred_check
      _
    $region23: #{tpu_custom_call.1} parent=1 // pred_check_branch
      %49 = sbr.rel (0) target = $region25
    $region24: #{tpu_custom_call.1} parent=1 // pred_region
      %50 = dma.done [#allocation5], 16
    $region25: #{tpu_custom_call.1} parent=1 // pred_fallthru
      _
    // Predicated region
    $region26: #{tpu_custom_call.1} parent=1 // pred_check
      _
    $region27: #{tpu_custom_call.1} parent=1 // pred_check_branch
      %52 = sbr.rel (0) target = $region29
    $region28: #{tpu_custom_call.1} parent=1 // pred_region
      %53 = dma.done [#allocation7], 16
    $region29: #{tpu_custom_call.1} parent=1 // pred_fallthru
      _
    // Predicated region
    $region30: #{tpu_custom_call.1} parent=1 // pred_check
      _
    $region31: #{tpu_custom_call.1} parent=1 // pred_check_branch
      %55 = sbr.rel (0) target = $region33
    $region32: #{tpu_custom_call.1} parent=1 // pred_region
      %56 = dma.done [#allocation7], 16
    $region33: #{tpu_custom_call.1} parent=1 // pred_fallthru
      _
    %57 = sfence
    %v58 = vld [vmem:[%s4] sm:$0xff]
    %s59 = sld [smem:[#allocation3]]
    %v60 = vstv %s59
    %v61 = vmul.f32 %v60, %v58
    %s62 = sld [smem:[#allocation6]]
    %v63 = vstv %s62
    %v64 = vadd.f32 %v61, %v63
    %v65 = vxor.u32 %v64, 2147483648
    %v66 = vmul.f32 %v65, 1.442695
    %v67 = vpow.pop %v66
    %v68 = vadd.f32 %v67, 1.0
    %v69 = vrcp.pop %v68
    %v70 = vmul.f32 1.0, %v69
    %s71 = sld [smem:[#allocation8]]
    %v72 = vstv %s71
    %v73 = vmul.f32 %v72, %v70
    %v74 = vadd.f32 %v73, 0.0
    %s75 = sld [smem:[#allocation3 + $0x1]]
    %v76 = vstv %s75
    %v77 = vmul.f32 %v76, %v58
    %s78 = sld [smem:[#allocation6 + $0x1]]
    %v79 = vstv %s78
    %v80 = vadd.f32 %v77, %v79
    %v81 = vxor.u32 %v80, 2147483648
    %v82 = vmul.f32 %v81, 1.442695
    %v83 = vpow.pop %v82
    %v84 = vadd.f32 %v83, 1.0
    %v85 = vrcp.pop %v84
    %v86 = vmul.f32 1.0, %v85
    %s87 = sld [smem:[#allocation8 + $0x1]]
    %v88 = vstv %s87
    %v89 = vmul.f32 %v88, %v86
    %v90 = vadd.f32 %v74, %v89
    %s91 = sld [smem:[#allocation3 + $0x2]]
    %v92 = vstv %s91
    %v93 = vmul.f32 %v92, %v58
    %s94 = sld [smem:[#allocation6 + $0x2]]
    %v95 = vstv %s94
    %v96 = vadd.f32 %v93, %v95
    %v97 = vxor.u32 %v96, 2147483648
    %v98 = vmul.f32 %v97, 1.442695
    %v99 = vpow.pop %v98
    %v100 = vadd.f32 %v99, 1.0
    %v101 = vrcp.pop %v100
    %v102 = vmul.f32 1.0, %v101
    %s103 = sld [smem:[#allocation8 + $0x2]]
    %v104 = vstv %s103
    %v105 = vmul.f32 %v104, %v102
    %v106 = vadd.f32 %v90, %v105
    %s107 = sld [smem:[#allocation3 + $0x3]]
    %v108 = vstv %s107
    %v109 = vmul.f32 %v108, %v58
    %s110 = sld [smem:[#allocation6 + $0x3]]
    %v111 = vstv %s110
    %v112 = vadd.f32 %v109, %v111
    %v113 = vxor.u32 %v112, 2147483648
    %v114 = vmul.f32 %v113, 1.442695
    %v115 = vpow.pop %v114
    %v116 = vadd.f32 %v115, 1.0
    %v117 = vrcp.pop %v116
    %v118 = vmul.f32 1.0, %v117
    %s119 = sld [smem:[#allocation8 + $0x3]]
    %v120 = vstv %s119
    %v121 = vmul.f32 %v120, %v118
    %v122 = vadd.f32 %v106, %v121
    %s123 = sld [smem:[#allocation3 + $0x4]]
    %v124 = vstv %s123
    %v125 = vmul.f32 %v124, %v58
    %s126 = sld [smem:[#allocation6 + $0x4]]
    %v127 = vstv %s126
    %v128 = vadd.f32 %v125, %v127
    %v129 = vxor.u32 %v128, 2147483648
    %v130 = vmul.f32 %v129, 1.442695
    %v131 = vpow.pop %v130
    %v132 = vadd.f32 %v131, 1.0
    %v133 = vrcp.pop %v132
    %v134 = vmul.f32 1.0, %v133
    %s135 = sld [smem:[#allocation8 + $0x4]]
    %v136 = vstv %s135
    %v137 = vmul.f32 %v136, %v134
    %v138 = vadd.f32 %v122, %v137
    %s139 = sld [smem:[#allocation3 + $0x5]]
    %v140 = vstv %s139
    %v141 = vmul.f32 %v140, %v58
    %s142 = sld [smem:[#allocation6 + $0x5]]
    %v143 = vstv %s142
    %v144 = vadd.f32 %v141, %v143
    %v145 = vxor.u32 %v144, 2147483648
    %v146 = vmul.f32 %v145, 1.442695
    %v147 = vpow.pop %v146
    %v148 = vadd.f32 %v147, 1.0
    %v149 = vrcp.pop %v148
    %v150 = vmul.f32 1.0, %v149
    %s151 = sld [smem:[#allocation8 + $0x5]]
    %v152 = vstv %s151
    %v153 = vmul.f32 %v152, %v150
    %v154 = vadd.f32 %v138, %v153
    %s155 = sld [smem:[#allocation3 + $0x6]]
    %v156 = vstv %s155
    %v157 = vmul.f32 %v156, %v58
    %s158 = sld [smem:[#allocation6 + $0x6]]
    %v159 = vstv %s158
    %v160 = vadd.f32 %v157, %v159
    %v161 = vxor.u32 %v160, 2147483648
    %v162 = vmul.f32 %v161, 1.442695
    %v163 = vpow.pop %v162
    %v164 = vadd.f32 %v163, 1.0
    %v165 = vrcp.pop %v164
    %v166 = vmul.f32 1.0, %v165
    %s167 = sld [smem:[#allocation8 + $0x6]]
    %v168 = vstv %s167
    %v169 = vmul.f32 %v168, %v166
    %v170 = vadd.f32 %v154, %v169
    %s171 = sld [smem:[#allocation3 + $0x7]]
    %v172 = vstv %s171
    %v173 = vmul.f32 %v172, %v58
    %s174 = sld [smem:[#allocation6 + $0x7]]
    %v175 = vstv %s174
    %v176 = vadd.f32 %v173, %v175
    %v177 = vxor.u32 %v176, 2147483648
    %v178 = vmul.f32 %v177, 1.442695
    %v179 = vpow.pop %v178
    %v180 = vadd.f32 %v179, 1.0
    %v181 = vrcp.pop %v180
    %v182 = vmul.f32 1.0, %v181
    %s183 = sld [smem:[#allocation8 + $0x7]]
    %v184 = vstv %s183
    %v185 = vmul.f32 %v184, %v182
    %v186 = vadd.f32 %v170, %v185
    %s187 = sld [smem:[#allocation3 + $0x8]]
    %v188 = vstv %s187
    %v189 = vmul.f32 %v188, %v58
    %s190 = sld [smem:[#allocation6 + $0x8]]
    %v191 = vstv %s190
    %v192 = vadd.f32 %v189, %v191
    %v193 = vxor.u32 %v192, 2147483648
    %v194 = vmul.f32 %v193, 1.442695
    %v195 = vpow.pop %v194
    %v196 = vadd.f32 %v195, 1.0
    %v197 = vrcp.pop %v196
    %v198 = vmul.f32 1.0, %v197
    %s199 = sld [smem:[#allocation8 + $0x8]]
    %v200 = vstv %s199
    %v201 = vmul.f32 %v200, %v198
    %v202 = vadd.f32 %v186, %v201
    %s203 = sld [smem:[#allocation3 + $0x9]]
    %v204 = vstv %s203
    %v205 = vmul.f32 %v204, %v58
    %s206 = sld [smem:[#allocation6 + $0x9]]
    %v207 = vstv %s206
    %v208 = vadd.f32 %v205, %v207
    %v209 = vxor.u32 %v208, 2147483648
    %v210 = vmul.f32 %v209, 1.442695
    %v211 = vpow.pop %v210
    %v212 = vadd.f32 %v211, 1.0
    %v213 = vrcp.pop %v212
    %v214 = vmul.f32 1.0, %v213
    %s215 = sld [smem:[#allocation8 + $0x9]]
    %v216 = vstv %s215
    %v217 = vmul.f32 %v216, %v214
    %v218 = vadd.f32 %v202, %v217
    %s219 = sld [smem:[#allocation2]]
    %v220 = vstv %s219
    %v221 = vadd.f32 %v218, %v220
    %222 = vst [vmem:[#allocation9] sm:$0xff] %v221
    // Predicated region
    $region34: #{tpu_custom_call.1} parent=1 // pred_check
      _
    $region35: #{tpu_custom_call.1} parent=1 // pred_check_branch
      %224 = sbr.rel (0) target = $region37
    $region36: #{tpu_custom_call.1} parent=1 // pred_region
      %s226 = ssub.s32 128, 128
      %227 = vsyncadd [#allocation4], %s226
      %s229 = sshll.u32 [#allocation9], 4
      %s230 = int_to_ptr.vmem [resolvable:$true] %s229
      %232 = dma.vmem_to_hbm [thread:$0]  %s230, 128, %s5, [#allocation4]
    $region37: #{tpu_custom_call.1} parent=1 // pred_fallthru
      _
    // Predicated region
    $region38: #{tpu_custom_call.1} parent=1 // pred_check
      _
    $region39: #{tpu_custom_call.1} parent=1 // pred_check_branch
      %234 = sbr.rel (0) target = $region41
    $region40: #{tpu_custom_call.1} parent=1 // pred_region
      %235 = dma.done [#allocation4], 128
    $region41: #{tpu_custom_call.1} parent=1 // pred_fallthru
      _
    %236 = vsyncpa [#allocation4], 1
    %237 = vsyncpa [#allocation5], 1
    %238 = vsyncpa [#allocation7], 1

</llo_original>
